<compile_context>
chip_gen: v7x
topology: tpu7x:2x2x1
jax: 0.10.0
libtpu: 0.0.40
codegen_flags: <defaults>
</compile_context>

<pallas_src>
import functools
import math

import jax
import jax.numpy as jnp
from jax.experimental import pallas as pl
from jax.experimental.pallas import tpu as pltpu


def _qkv_proj_kernel(x_ref, wq_ref, wk_ref, wv_ref, q_ref, k_ref, v_ref):
    """Grid = (B, H): per-(batch, head) Q/K/V projections, [S, D] @ [D, hd]."""
    x = x_ref[0]                                                   # [S, D] bf16
    q_ref[0, 0] = jnp.dot(x, wq_ref[0],
                          preferred_element_type=jnp.float32).astype(q_ref.dtype)
    k_ref[0, 0] = jnp.dot(x, wk_ref[0],
                          preferred_element_type=jnp.float32).astype(k_ref.dtype)
    v_ref[0, 0] = jnp.dot(x, wv_ref[0],
                          preferred_element_type=jnp.float32).astype(v_ref.dtype)


def _attention_kernel(q_ref, k_ref, v_ref, wo_ref, out_ref, *maybe_attn_ref,
                      scale):
    """Grid = (B, n_q): all-heads attention for one query tile + out proj."""
    attn_ref = maybe_attn_ref[0] if maybe_attn_ref else None

    qh = q_ref[0]                                                  # [H, TQ, hd] bf16
    kh = k_ref[0]                                                  # [H, S,  hd] bf16
    vh = v_ref[0]                                                  # [H, S,  hd] bf16
    H = qh.shape[0]

    # ---- scores for all heads (bf16 operands, f32 accumulation) -------------
    # scale is applied to the f32 scores, not folded into bf16 q.
    s = jnp.einsum("hqd,hkd->hqk", qh, kh,
                   preferred_element_type=jnp.float32) * scale     # [H, TQ, S]

    # ---- numerically stable softmax in f32 (one reciprocal per row) ---------
    m = jnp.max(s, axis=-1, keepdims=True)
    e = jnp.exp(s - m)
    attn = e * pl.reciprocal(jnp.sum(e, axis=-1, keepdims=True), approx=True)

    if attn_ref is not None:
        attn_ref[0] = attn.astype(attn_ref.dtype)

    # ---- attn @ V (bf16 operands) -------------------------------------------
    ctx = jnp.einsum("hqk,hkd->hqd", attn.astype(vh.dtype), vh,
                     preferred_element_type=jnp.float32)           # [H, TQ, hd]

    # ---- output projection: per-head matmul, then sum over heads ------------
    # (no lane-sliced ctx slab; heads are combined with H-1 full-tile adds)
    per_head = jnp.einsum("hqd,hdD->hqD", ctx.astype(wo_ref.dtype), wo_ref[...],
                          preferred_element_type=jnp.float32)      # [H, TQ, D]
    out = per_head[0]
    for h in range(1, H):
        out = out + per_head[h]
    out_ref[0] = out.astype(out_ref.dtype)


def multi_head_attention(x, wq, wk, wv, wo, num_heads, *, q_block=128,
                         attn_dtype=jnp.float32, return_attn_weights=True):
    """MultiHeadAttention forward pass.  Returns (output, attn_weights) or
    just output when return_attn_weights=False.

    q_block: query-tile size (use 256 on v5e/v6e, 128/64 on v7x's 64 MiB VMEM).
    """
    B, S, D = x.shape
    assert D % num_heads == 0
    hd = D // num_heads
    tq = min(q_block, S)
    assert S % tq == 0, "seq_len must be divisible by the query tile size"
    n_q = S // tq

    # ---- wrapper-side casts / weight reshapes (free XLA layout plumbing) ----
    x_bf = x.astype(jnp.bfloat16)
    # [D, D] -> [H, D, hd]: column block h of the projection weight = head h.
    wq_h = wq.reshape(D, num_heads, hd).transpose(1, 0, 2).astype(jnp.bfloat16)
    wk_h = wk.reshape(D, num_heads, hd).transpose(1, 0, 2).astype(jnp.bfloat16)
    wv_h = wv.reshape(D, num_heads, hd).transpose(1, 0, 2).astype(jnp.bfloat16)
    # [D, D] -> [H, hd, D]: row block h of the output weight = head h.
    wo_h = wo.reshape(num_heads, hd, D).astype(jnp.bfloat16)

    # ---- kernel 1: Q/K/V head projections, grid (B, H) ----------------------
    w_spec = pl.BlockSpec((1, D, hd), lambda b, h: (h, 0, 0))
    head_out_spec = pl.BlockSpec((1, 1, S, hd), lambda b, h: (b, h, 0, 0))
    qh, kh, vh = pl.pallas_call(
        _qkv_proj_kernel,
        out_shape=tuple(
            jax.ShapeDtypeStruct((B, num_heads, S, hd), jnp.bfloat16)
            for _ in range(3)),
        grid_spec=pltpu.PrefetchScalarGridSpec(
            num_scalar_prefetch=0,
            grid=(B, num_heads),
            in_specs=[
                pl.BlockSpec((1, S, D), lambda b, h: (b, 0, 0)),  # reused over h
                w_spec, w_spec, w_spec,
            ],
            out_specs=[head_out_spec, head_out_spec, head_out_spec],
        ),
        compiler_params=pltpu.CompilerParams(
            dimension_semantics=("parallel", "parallel")),
    )(x_bf, wq_h, wk_h, wv_h)

    # ---- kernel 2: attention + output projection, grid (B, n_q) -------------
    kernel = functools.partial(_attention_kernel, scale=1.0 / math.sqrt(hd))

    in_specs = [
        pl.BlockSpec((1, num_heads, tq, hd), lambda b, qb: (b, 0, qb, 0)),
        pl.BlockSpec((1, num_heads, S, hd), lambda b, qb: (b, 0, 0, 0)),
        pl.BlockSpec((1, num_heads, S, hd), lambda b, qb: (b, 0, 0, 0)),
        pl.BlockSpec((num_heads, hd, D), lambda b, qb: (0, 0, 0)),
    ]
    out_spec = pl.BlockSpec((1, tq, D), lambda b, qb: (b, qb, 0))
    if return_attn_weights:
        out_shape = (jax.ShapeDtypeStruct((B, S, D), x.dtype),
                     jax.ShapeDtypeStruct((B, num_heads, S, S), attn_dtype))
        out_specs = [out_spec,
                     pl.BlockSpec((1, num_heads, tq, S),
                                  lambda b, qb: (b, 0, qb, 0))]
    else:
        out_shape = jax.ShapeDtypeStruct((B, S, D), x.dtype)
        out_specs = out_spec

    result = pl.pallas_call(
        kernel,
        out_shape=out_shape,
        grid_spec=pltpu.PrefetchScalarGridSpec(
            num_scalar_prefetch=0,
            grid=(B, n_q),
            in_specs=in_specs,
            out_specs=out_specs,
        ),
        compiler_params=pltpu.CompilerParams(
            dimension_semantics=("parallel", "parallel")),
    )(qh, kh, vh, wo_h)

    if return_attn_weights:
        out, attn = result
        return out, attn
    return result


def _reference(x, wq, wk, wv, wo, num_heads):
    # pure-JAX f32 reference mirroring the PyTorch MultiHeadAttention forward
    B, S, D = x.shape
    hd = D // num_heads
    q = (x @ wq).reshape(B, S, num_heads, hd).transpose(0, 2, 1, 3)
    k = (x @ wk).reshape(B, S, num_heads, hd).transpose(0, 2, 1, 3)
    v = (x @ wv).reshape(B, S, num_heads, hd).transpose(0, 2, 1, 3)
    scores = jnp.einsum("bhqd,bhkd->bhqk", q, k) / math.sqrt(hd)
    attn = jax.nn.softmax(scores, axis=-1)
    o = jnp.einsum("bhqk,bhkd->bhqd", attn, v)
    o = o.transpose(0, 2, 1, 3).reshape(B, S, D)
    return o @ wo, attn


if __name__ == "__main__":
    B, S, D, H = 2, 8, 32, 4

    key = jax.random.PRNGKey(0)
    kx, kq, kk, kv, ko = jax.random.split(key, 5)
    x = jax.random.normal(kx, (B, S, D), dtype=jnp.float32)
    # deterministic "Linear"-style init (uniform in +/- 1/sqrt(fan_in)), no bias
    bound = 1.0 / math.sqrt(D)
    wq = jax.random.uniform(kq, (D, D), jnp.float32, -bound, bound)
    wk = jax.random.uniform(kk, (D, D), jnp.float32, -bound, bound)
    wv = jax.random.uniform(kv, (D, D), jnp.float32, -bound, bound)
    wo = jax.random.uniform(ko, (D, D), jnp.float32, -bound, bound)

    out, attn = multi_head_attention(x, wq, wk, wv, wo, H)
    out = jax.block_until_ready(out)
    attn = jax.block_until_ready(attn)

    out_only = jax.block_until_ready(
        multi_head_attention(x, wq, wk, wv, wo, H, return_attn_weights=False))

    ref_out, ref_attn = _reference(x, wq, wk, wv, wo, H)
    assert out.shape == (B, S, D)
    assert attn.shape == (B, H, S, S)
    # bf16 MXU operands (with f32 accumulation) need looser tolerances than
    # the original f32-everywhere 1e-5 check.
    assert jnp.allclose(out, ref_out, atol=4e-2, rtol=4e-2), \
        float(jnp.max(jnp.abs(out - ref_out)))
    assert jnp.allclose(attn, ref_attn, atol=4e-2, rtol=4e-2), \
        float(jnp.max(jnp.abs(attn - ref_attn)))
    assert jnp.allclose(out_only, out, atol=1e-6, rtol=1e-6)

    print("KERNEL_OK")
</pallas_src>

<mosaic_0001>
module attributes {stable_mosaic.version = 11 : i64} {
  func.func @_qkv_proj_kernel(%arg0: i32, %arg1: i32, %arg2: memref<1x8x32xbf16, #tpu.memory_space<vmem>>, %arg3: memref<1x32x8xbf16, #tpu.memory_space<vmem>>, %arg4: memref<1x32x8xbf16, #tpu.memory_space<vmem>>, %arg5: memref<1x32x8xbf16, #tpu.memory_space<vmem>>, %arg6: memref<1x1x8x8xbf16, #tpu.memory_space<vmem>>, %arg7: memref<1x1x8x8xbf16, #tpu.memory_space<vmem>>, %arg8: memref<1x1x8x8xbf16, #tpu.memory_space<vmem>>) attributes {dimension_semantics = [#tpu.dimension_semantics<parallel>, #tpu.dimension_semantics<parallel>], iteration_bounds = array<i64: 2, 4>, scalar_prefetch = 0 : i64, scratch_operands = 0 : i64, tpu.core_type = #tpu.core_type<tc>, window_params = [{transform_indices = @transform_0, window_bounds = array<i64: 1, 8, 32>}, {transform_indices = @transform_1, window_bounds = array<i64: 1, 32, 8>}, {transform_indices = @transform_2, window_bounds = array<i64: 1, 32, 8>}, {transform_indices = @transform_3, window_bounds = array<i64: 1, 32, 8>}, {transform_indices = @transform_4, window_bounds = array<i64: 1, 1, 8, 8>}, {transform_indices = @transform_5, window_bounds = array<i64: 1, 1, 8, 8>}, {transform_indices = @transform_6, window_bounds = array<i64: 1, 1, 8, 8>}]} {
    %c0 = arith.constant 0 : index
    %c0_0 = arith.constant 0 : index
    %c0_1 = arith.constant 0 : index
    %0 = vector.load %arg2[%c0, %c0_0, %c0_1] : memref<1x8x32xbf16, #tpu.memory_space<vmem>>, vector<1x8x32xbf16>
    %1 = vector.shape_cast %0 : vector<1x8x32xbf16> to vector<8x32xbf16>
    %c0_2 = arith.constant 0 : index
    %c0_3 = arith.constant 0 : index
    %c0_4 = arith.constant 0 : index
    %2 = vector.load %arg3[%c0_2, %c0_3, %c0_4] : memref<1x32x8xbf16, #tpu.memory_space<vmem>>, vector<1x32x8xbf16>
    %3 = vector.shape_cast %2 : vector<1x32x8xbf16> to vector<32x8xbf16>
    %cst = arith.constant dense<0.000000e+00> : vector<8x8xf32>
    %4 = tpu.matmul %1, %3, %cst {dimension_numbers = #tpu.dot_dimension_numbers<[1], [0], [0], [1], [0, 0, 1, 1], [], []>} : vector<8x32xbf16>, vector<32x8xbf16>, vector<8x8xf32> -> vector<8x8xf32>
    %5 = arith.truncf %4 : vector<8x8xf32> to vector<8x8xbf16>
    %c0_5 = arith.constant 0 : index
    %c0_6 = arith.constant 0 : index
    %c0_7 = arith.constant 0 : index
    %c0_8 = arith.constant 0 : index
    %6 = vector.load %arg6[%c0_5, %c0_6, %c0_7, %c0_8] : memref<1x1x8x8xbf16, #tpu.memory_space<vmem>>, vector<1x1x8x8xbf16>
    %7 = vector.shape_cast %6 : vector<1x1x8x8xbf16> to vector<8x8xbf16>
    %8 = vector.shape_cast %5 : vector<8x8xbf16> to vector<1x1x8x8xbf16>
    tpu.vector_store %arg6[%c0_5, %c0_6, %c0_7, %c0_8], %8 {strides = array<i32>} : memref<1x1x8x8xbf16, #tpu.memory_space<vmem>>, vector<1x1x8x8xbf16>,
    %c0_9 = arith.constant 0 : index
    %c0_10 = arith.constant 0 : index
    %c0_11 = arith.constant 0 : index
    %9 = vector.load %arg4[%c0_9, %c0_10, %c0_11] : memref<1x32x8xbf16, #tpu.memory_space<vmem>>, vector<1x32x8xbf16>
    %10 = vector.shape_cast %9 : vector<1x32x8xbf16> to vector<32x8xbf16>
    %cst_12 = arith.constant dense<0.000000e+00> : vector<8x8xf32>
    %11 = tpu.matmul %1, %10, %cst_12 {dimension_numbers = #tpu.dot_dimension_numbers<[1], [0], [0], [1], [0, 0, 1, 1], [], []>} : vector<8x32xbf16>, vector<32x8xbf16>, vector<8x8xf32> -> vector<8x8xf32>
    %12 = arith.truncf %11 : vector<8x8xf32> to vector<8x8xbf16>
    %c0_13 = arith.constant 0 : index
    %c0_14 = arith.constant 0 : index
    %c0_15 = arith.constant 0 : index
    %c0_16 = arith.constant 0 : index
    %13 = vector.load %arg7[%c0_13, %c0_14, %c0_15, %c0_16] : memref<1x1x8x8xbf16, #tpu.memory_space<vmem>>, vector<1x1x8x8xbf16>
    %14 = vector.shape_cast %13 : vector<1x1x8x8xbf16> to vector<8x8xbf16>
    %15 = vector.shape_cast %12 : vector<8x8xbf16> to vector<1x1x8x8xbf16>
    tpu.vector_store %arg7[%c0_13, %c0_14, %c0_15, %c0_16], %15 {strides = array<i32>} : memref<1x1x8x8xbf16, #tpu.memory_space<vmem>>, vector<1x1x8x8xbf16>,
    %c0_17 = arith.constant 0 : index
    %c0_18 = arith.constant 0 : index
    %c0_19 = arith.constant 0 : index
    %16 = vector.load %arg5[%c0_17, %c0_18, %c0_19] : memref<1x32x8xbf16, #tpu.memory_space<vmem>>, vector<1x32x8xbf16>
    %17 = vector.shape_cast %16 : vector<1x32x8xbf16> to vector<32x8xbf16>
    %cst_20 = arith.constant dense<0.000000e+00> : vector<8x8xf32>
    %18 = tpu.matmul %1, %17, %cst_20 {dimension_numbers = #tpu.dot_dimension_numbers<[1], [0], [0], [1], [0, 0, 1, 1], [], []>} : vector<8x32xbf16>, vector<32x8xbf16>, vector<8x8xf32> -> vector<8x8xf32>
    %19 = arith.truncf %18 : vector<8x8xf32> to vector<8x8xbf16>
    %c0_21 = arith.constant 0 : index
    %c0_22 = arith.constant 0 : index
    %c0_23 = arith.constant 0 : index
    %c0_24 = arith.constant 0 : index
    %20 = vector.load %arg8[%c0_21, %c0_22, %c0_23, %c0_24] : memref<1x1x8x8xbf16, #tpu.memory_space<vmem>>, vector<1x1x8x8xbf16>
    %21 = vector.shape_cast %20 : vector<1x1x8x8xbf16> to vector<8x8xbf16>
    %22 = vector.shape_cast %19 : vector<8x8xbf16> to vector<1x1x8x8xbf16>
    tpu.vector_store %arg8[%c0_21, %c0_22, %c0_23, %c0_24], %22 {strides = array<i32>} : memref<1x1x8x8xbf16, #tpu.memory_space<vmem>>, vector<1x1x8x8xbf16>,
    return
  }
  func.func @transform_0(%arg0: i32, %arg1: i32) -> (i32, i32, i32) {
    %c0_i32 = arith.constant 0 : i32
    %c0_i32_0 = arith.constant 0 : i32
    %c0_i32_1 = arith.constant 0 : i32
    return %arg0, %c0_i32, %c0_i32_0 : i32, i32, i32
  }
  func.func @transform_1(%arg0: i32, %arg1: i32) -> (i32, i32, i32) {
    %c0_i32 = arith.constant 0 : i32
    %c0_i32_0 = arith.constant 0 : i32
    %c0_i32_1 = arith.constant 0 : i32
    return %arg1, %c0_i32, %c0_i32_0 : i32, i32, i32
  }
  func.func @transform_2(%arg0: i32, %arg1: i32) -> (i32, i32, i32) {
    %c0_i32 = arith.constant 0 : i32
    %c0_i32_0 = arith.constant 0 : i32
    %c0_i32_1 = arith.constant 0 : i32
    return %arg1, %c0_i32, %c0_i32_0 : i32, i32, i32
  }
  func.func @transform_3(%arg0: i32, %arg1: i32) -> (i32, i32, i32) {
    %c0_i32 = arith.constant 0 : i32
    %c0_i32_0 = arith.constant 0 : i32
    %c0_i32_1 = arith.constant 0 : i32
    return %arg1, %c0_i32, %c0_i32_0 : i32, i32, i32
  }
  func.func @transform_4(%arg0: i32, %arg1: i32) -> (i32, i32, i32, i32) {
    %c0_i32 = arith.constant 0 : i32
    %c0_i32_0 = arith.constant 0 : i32
    %c0_i32_1 = arith.constant 0 : i32
    return %arg0, %arg1, %c0_i32, %c0_i32_0 : i32, i32, i32, i32
  }
  func.func @transform_5(%arg0: i32, %arg1: i32) -> (i32, i32, i32, i32) {
    %c0_i32 = arith.constant 0 : i32
    %c0_i32_0 = arith.constant 0 : i32
    %c0_i32_1 = arith.constant 0 : i32
    return %arg0, %arg1, %c0_i32, %c0_i32_0 : i32, i32, i32, i32
  }
  func.func @transform_6(%arg0: i32, %arg1: i32) -> (i32, i32, i32, i32) {
    %c0_i32 = arith.constant 0 : i32
    %c0_i32_0 = arith.constant 0 : i32
    %c0_i32_1 = arith.constant 0 : i32
    return %arg0, %arg1, %c0_i32, %c0_i32_0 : i32, i32, i32, i32
  }
}

</mosaic_0001>

<llo_original>
// kernel: tpu_custom_call.1
$region0: #{tpu_custom_call.1}
  #allocation0 [shape = 'u32[]', space=smem, size = 0x4, offset = 0x4, fixed_abs, tag = 'smem constant byte address 0x4 - core index']
  #allocation1 [shape = 'u32[144,128]{1,0:T(1,128)}', space=vmem, size = 0x12000, scoped, tag = 'internal scratch']
  %s0 = inlined_call_operand.vmem [shape: bf16[2,8,32], index: 0, kind: input, shape index: {}]
  %s1 = inlined_call_operand.vmem [shape: bf16[4,32,8], index: 1, kind: input, shape index: {}]
  %s2 = inlined_call_operand.vmem [shape: bf16[4,32,8], index: 2, kind: input, shape index: {}]
  %s3 = inlined_call_operand.vmem [shape: bf16[4,32,8], index: 3, kind: input, shape index: {}]
  %s4 = inlined_call_operand.hbm [shape: bf16[2,4,8,8], index: 4, kind: output, shape index: {0}]
  %s5 = inlined_call_operand.hbm [shape: bf16[2,4,8,8], index: 5, kind: output, shape index: {1}]
  %s6 = inlined_call_operand.hbm [shape: bf16[2,4,8,8], index: 6, kind: output, shape index: {2}]
  %7 = xla_tuple %s4, %s5, %s6
  %s8 = sld [smem:[#allocation0]]
  $region65: #{tpu_custom_call.1} parent=0
    _
  %s10 = ssub.s32 1, %s8
  %s11 = scalar_select 0, %s10, %s8
  $region1: #{tpu_custom_call.1} parent=0
    #allocation2 [shape = 'u8[4096]{0}', space=vmem, size = 0x1000, scoped, tag = 'output window, operand 0']
    #allocation3 [shape = 's32[2]{0}', space=sflag, size = 0x8, scoped, tag = 'scoped memory for tpu_custom_call.1']
    #allocation4 [shape = 'u8[4096]{0}', space=vmem, size = 0x1000, scoped, tag = 'output window, operand 1']
    #allocation5 [shape = 's32[2]{0}', space=sflag, size = 0x8, scoped, tag = 'scoped memory for tpu_custom_call.1']
    #allocation6 [shape = 'u8[4096]{0}', space=vmem, size = 0x1000, scoped, tag = 'output window, operand 2']
    %12 = vsyncpa [#allocation3], 0
    %s13 = scalar_lea.sflag [#allocation3], 1
    %14 = vsyncpa %s13, 0
    %15 = vsyncpa [#allocation5], 0
    %s16 = scalar_lea.sflag [#allocation5], 1
    %17 = vsyncpa %s16, 0
    loop: start=0, step=1, limit=10
    $region2: #{tpu_custom_call.1} parent=1 // loop_pre_header
      _
    $region3: #{tpu_custom_call.1} parent=1 // loop_header
      %s19 = sphi 0, %s23
      %p20 = scmp.ge.s32.totalorder %s19, 10
      %s26 = sphi 0, %s38
      %s27 = sphi 0, %s34
      %s28 = sphi 0, %s26
      %s29 = sphi 0, %s27
      %s30 = sphi 0, %s28
      %s31 = sphi 0, %s29
      %s41 = sphi 0, %s43
      %s44 = sphi 0, %s41
      %s45 = sphi 0, %s44
      %s61 = sphi 0, %s45
      %s67 = sphi 0, %s69
      %s70 = sphi 0, %s67
      %s71 = sphi 0, %s70
      %s87 = sphi 0, %s71
      %s93 = sphi 0, %s95
      %s96 = sphi 0, %s93
      %s97 = sphi 0, %s96
      %s113 = sphi 0, %s97
      %s119 = sphi 0, %s121
      %s122 = sphi 0, %s119
      %s123 = sphi 0, %s122
      %s139 = sphi 0, %s123
      %s147 = sphi 0, %s149
      %s150 = sphi 0, %s147
      %s151 = sphi 0, %s150
      %s167 = sphi 0, %s151
      %s175 = sphi 0, %s177
      %s178 = sphi 0, %s175
      %s179 = sphi 0, %s178
      %s195 = sphi 0, %s179
      %s203 = sphi 0, %s205
      %s206 = sphi 0, %s203
      %s207 = sphi 0, %s206
      %s223 = sphi 0, %s207
    $region4: #{tpu_custom_call.1} parent=1 // loop_header_branch
      %22 = sbr.rel (%p20) target = $region8
    $region5: #{tpu_custom_call.1} parent=1 // loop_body
      %s24 = ssub.s32 %s19, 1
      %s25 = ssub.s32 %s19, 2
      %s32 = sadd.s32 1, %s27
      %p33 = scmp.ge.s32.totalorder %s32, 4
      %s34 = scalar_select %p33, 0, %s32
      %s35 = sadd.s32 1, %s26
      %s36 = scalar_select %p33, %s35, %s26
      %p37 = scmp.ge.s32.totalorder %s36, 2
      %s38 = scalar_select %p37, 0, %s36
      %s39 = ssub.s32 %s26, %s38
      %p40 = scmp.eq.s32.totalorder %s39, 0
      %s42 = sadd.s32 %s41, 1
      %s43 = scalar_select %p40, %s41, %s42
      %p46 = pneg %p40
      %p47 = scmp.eq.s32.totalorder %s19, 7
      %p48 = por %p46, %p47
      %p49 = scmp.ne.s32.totalorder %s41, %s44
      %p50 = scmp.eq.s32.totalorder %s19, 0
      %p51 = por %p49, %p50
      %p52 = scmp.ne.s32.totalorder %s41, %s44
      %p53 = scmp.eq.s32.totalorder %s24, 7
      %p54 = por %p52, %p53
      %p55 = scmp.ne.s32.totalorder %s44, %s45
      %p56 = scmp.eq.s32.totalorder %s24, 0
      %p57 = por %p55, %p56
      %p58 = scmp.ne.s32.totalorder %s44, %s45
      %p59 = scmp.eq.s32.totalorder %s25, 7
      %p60 = por %p58, %p59
      %p62 = scmp.ne.s32.totalorder %s45, %s61
      %p63 = scmp.eq.s32.totalorder %s25, 0
      %p64 = por %p62, %p63
      %s65 = ssub.s32 %s27, %s34
      %p66 = scmp.eq.s32.totalorder %s65, 0
      %s68 = sadd.s32 %s67, 1
      %s69 = scalar_select %p66, %s67, %s68
      %p72 = pneg %p66
      %p73 = scmp.eq.s32.totalorder %s19, 7
      %p74 = por %p72, %p73
      %p75 = scmp.ne.s32.totalorder %s67, %s70
      %p76 = scmp.eq.s32.totalorder %s19, 0
      %p77 = por %p75, %p76
      %p78 = scmp.ne.s32.totalorder %s67, %s70
      %p79 = scmp.eq.s32.totalorder %s24, 7
      %p80 = por %p78, %p79
      %p81 = scmp.ne.s32.totalorder %s70, %s71
      %p82 = scmp.eq.s32.totalorder %s24, 0
      %p83 = por %p81, %p82
      %p84 = scmp.ne.s32.totalorder %s70, %s71
      %p85 = scmp.eq.s32.totalorder %s25, 7
      %p86 = por %p84, %p85
      %p88 = scmp.ne.s32.totalorder %s71, %s87
      %p89 = scmp.eq.s32.totalorder %s25, 0
      %p90 = por %p88, %p89
      %s91 = ssub.s32 %s27, %s34
      %p92 = scmp.eq.s32.totalorder %s91, 0
      %s94 = sadd.s32 %s93, 1
      %s95 = scalar_select %p92, %s93, %s94
      %p98 = pneg %p92
      %p99 = scmp.eq.s32.totalorder %s19, 7
      %p100 = por %p98, %p99
      %p101 = scmp.ne.s32.totalorder %s93, %s96
      %p102 = scmp.eq.s32.totalorder %s19, 0
      %p103 = por %p101, %p102
      %p104 = scmp.ne.s32.totalorder %s93, %s96
      %p105 = scmp.eq.s32.totalorder %s24, 7
      %p106 = por %p104, %p105
      %p107 = scmp.ne.s32.totalorder %s96, %s97
      %p108 = scmp.eq.s32.totalorder %s24, 0
      %p109 = por %p107, %p108
      %p110 = scmp.ne.s32.totalorder %s96, %s97
      %p111 = scmp.eq.s32.totalorder %s25, 7
      %p112 = por %p110, %p111
      %p114 = scmp.ne.s32.totalorder %s97, %s113
      %p115 = scmp.eq.s32.totalorder %s25, 0
      %p116 = por %p114, %p115
      %s117 = ssub.s32 %s27, %s34
      %p118 = scmp.eq.s32.totalorder %s117, 0
      %s120 = sadd.s32 %s119, 1
      %s121 = scalar_select %p118, %s119, %s120
      %p124 = pneg %p118
      %p125 = scmp.eq.s32.totalorder %s19, 7
      %p126 = por %p124, %p125
      %p127 = scmp.ne.s32.totalorder %s119, %s122
      %p128 = scmp.eq.s32.totalorder %s19, 0
      %p129 = por %p127, %p128
      %p130 = scmp.ne.s32.totalorder %s119, %s122
      %p131 = scmp.eq.s32.totalorder %s24, 7
      %p132 = por %p130, %p131
      %p133 = scmp.ne.s32.totalorder %s122, %s123
      %p134 = scmp.eq.s32.totalorder %s24, 0
      %p135 = por %p133, %p134
      %p136 = scmp.ne.s32.totalorder %s122, %s123
      %p137 = scmp.eq.s32.totalorder %s25, 7
      %p138 = por %p136, %p137
      %p140 = scmp.ne.s32.totalorder %s123, %s139
      %p141 = scmp.eq.s32.totalorder %s25, 0
      %p142 = por %p140, %p141
      %s143 = ssub.s32 %s26, %s38
      %s144 = ssub.s32 %s27, %s34
      %s145 = sor.u32 %s143, %s144
      %p146 = scmp.eq.s32.totalorder %s145, 0
      %s148 = sadd.s32 %s147, 1
      %s149 = scalar_select %p146, %s147, %s148
      %p152 = pneg %p146
      %p153 = scmp.eq.s32.totalorder %s19, 7
      %p154 = por %p152, %p153
      %p155 = scmp.ne.s32.totalorder %s147, %s150
      %p156 = scmp.eq.s32.totalorder %s19, 0
      %p157 = por %p155, %p156
      %p158 = scmp.ne.s32.totalorder %s147, %s150
      %p159 = scmp.eq.s32.totalorder %s24, 7
      %p160 = por %p158, %p159
      %p161 = scmp.ne.s32.totalorder %s150, %s151
      %p162 = scmp.eq.s32.totalorder %s24, 0
      %p163 = por %p161, %p162
      %p164 = scmp.ne.s32.totalorder %s150, %s151
      %p165 = scmp.eq.s32.totalorder %s25, 7
      %p166 = por %p164, %p165
      %p168 = scmp.ne.s32.totalorder %s151, %s167
      %p169 = scmp.eq.s32.totalorder %s25, 0
      %p170 = por %p168, %p169
      %s171 = ssub.s32 %s26, %s38
      %s172 = ssub.s32 %s27, %s34
      %s173 = sor.u32 %s171, %s172
      %p174 = scmp.eq.s32.totalorder %s173, 0
      %s176 = sadd.s32 %s175, 1
      %s177 = scalar_select %p174, %s175, %s176
      %p180 = pneg %p174
      %p181 = scmp.eq.s32.totalorder %s19, 7
      %p182 = por %p180, %p181
      %p183 = scmp.ne.s32.totalorder %s175, %s178
      %p184 = scmp.eq.s32.totalorder %s19, 0
      %p185 = por %p183, %p184
      %p186 = scmp.ne.s32.totalorder %s175, %s178
      %p187 = scmp.eq.s32.totalorder %s24, 7
      %p188 = por %p186, %p187
      %p189 = scmp.ne.s32.totalorder %s178, %s179
      %p190 = scmp.eq.s32.totalorder %s24, 0
      %p191 = por %p189, %p190
      %p192 = scmp.ne.s32.totalorder %s178, %s179
      %p193 = scmp.eq.s32.totalorder %s25, 7
      %p194 = por %p192, %p193
      %p196 = scmp.ne.s32.totalorder %s179, %s195
      %p197 = scmp.eq.s32.totalorder %s25, 0
      %p198 = por %p196, %p197
      %s199 = ssub.s32 %s26, %s38
      %s200 = ssub.s32 %s27, %s34
      %s201 = sor.u32 %s199, %s200
      %p202 = scmp.eq.s32.totalorder %s201, 0
      %s204 = sadd.s32 %s203, 1
      %s205 = scalar_select %p202, %s203, %s204
      %p208 = pneg %p202
      %p209 = scmp.eq.s32.totalorder %s19, 7
      %p210 = por %p208, %p209
      %p211 = scmp.ne.s32.totalorder %s203, %s206
      %p212 = scmp.eq.s32.totalorder %s19, 0
      %p213 = por %p211, %p212
      %p214 = scmp.ne.s32.totalorder %s203, %s206
      %p215 = scmp.eq.s32.totalorder %s24, 7
      %p216 = por %p214, %p215
      %p217 = scmp.ne.s32.totalorder %s206, %s207
      %p218 = scmp.eq.s32.totalorder %s24, 0
      %p219 = por %p217, %p218
      %p220 = scmp.ne.s32.totalorder %s206, %s207
      %p221 = scmp.eq.s32.totalorder %s25, 7
      %p222 = por %p220, %p221
      %p224 = scmp.ne.s32.totalorder %s207, %s223
      %p225 = scmp.eq.s32.totalorder %s25, 0
      %p226 = por %p224, %p225
      %p227 = scmp.le.s32.totalorder 1, %s19
      %p228 = scmp.lt.s32.totalorder %s19, 9
      %p229 = pnand %p227, %p228
      %p230 = pneg %p229
      // Predicated region
      $region9: #{tpu_custom_call.1} parent=5 // pred_check
        _
      $region10: #{tpu_custom_call.1} parent=5 // pred_check_branch
        %232 = sbr.rel (%p229) target = $region12
      $region11: #{tpu_custom_call.1} parent=5 // pred_region
        %s233 = ssub.s32 %s19, 1
      $region12: #{tpu_custom_call.1} parent=5 // pred_fallthru
        _
      %p234 = scmp.lt.s32.totalorder %s19, 8
      // Predicated region
      $region13: #{tpu_custom_call.1} parent=5 // pred_check
        %p235 = pneg %p234
      $region14: #{tpu_custom_call.1} parent=5 // pred_check_branch
        %237 = sbr.rel (%p235) target = $region16
      $region15: #{tpu_custom_call.1} parent=5 // pred_region
        // Predicated region
        $region17: #{tpu_custom_call.1} parent=15 // pred_check
          %p238 = pneg %p51
        $region18: #{tpu_custom_call.1} parent=15 // pred_check_branch
          %240 = sbr.rel (%p238) target = $region20
        $region19: #{tpu_custom_call.1} parent=15 // pred_region
          %p241 = scmp.lt.s32.totalorder %s26, 1
          %s242 = scalar_select %p241, %s26, 1
          %s243 = smul.addr %s242, 4
          %s244 = scalar_lea.vmem %s0, %s243
        $region20: #{tpu_custom_call.1} parent=15 // pred_fallthru
          _
        // Predicated region
        $region21: #{tpu_custom_call.1} parent=15 // pred_check
          %p245 = pneg %p77
        $region22: #{tpu_custom_call.1} parent=15 // pred_check_branch
          %247 = sbr.rel (%p245) target = $region24
        $region23: #{tpu_custom_call.1} parent=15 // pred_region
          %p248 = scmp.lt.s32.totalorder %s27, 3
          %s249 = scalar_select %p248, %s27, 3
          %s250 = smul.addr %s249, 4
          %s251 = smul.addr %s250, 4
          %s252 = scalar_lea.vmem %s1, %s251
        $region24: #{tpu_custom_call.1} parent=15 // pred_fallthru
          _
        // Predicated region
        $region25: #{tpu_custom_call.1} parent=15 // pred_check
          %p253 = pneg %p103
        $region26: #{tpu_custom_call.1} parent=15 // pred_check_branch
          %255 = sbr.rel (%p253) target = $region28
        $region27: #{tpu_custom_call.1} parent=15 // pred_region
          %p256 = scmp.lt.s32.totalorder %s27, 3
          %s257 = scalar_select %p256, %s27, 3
          %s258 = smul.addr %s257, 4
          %s259 = smul.addr %s258, 4
          %s260 = scalar_lea.vmem %s2, %s259
        $region28: #{tpu_custom_call.1} parent=15 // pred_fallthru
          _
        // Predicated region
        $region29: #{tpu_custom_call.1} parent=15 // pred_check
          %p261 = pneg %p129
        $region30: #{tpu_custom_call.1} parent=15 // pred_check_branch
          %263 = sbr.rel (%p261) target = $region32
        $region31: #{tpu_custom_call.1} parent=15 // pred_region
          %p264 = scmp.lt.s32.totalorder %s27, 3
          %s265 = scalar_select %p264, %s27, 3
          %s266 = smul.addr %s265, 4
          %s267 = smul.addr %s266, 4
          %s268 = scalar_lea.vmem %s3, %s267
        $region32: #{tpu_custom_call.1} parent=15 // pred_fallthru
          _
      $region16: #{tpu_custom_call.1} parent=5 // pred_fallthru
        _
      %p269 = scmp.le.s32.totalorder 1, %s19
      %p270 = scmp.lt.s32.totalorder %s19, 9
      %p271 = pnand %p269, %p270
      %p272 = pneg %p271
      // Predicated region
      $region33: #{tpu_custom_call.1} parent=5 // pred_check
        _
      $region34: #{tpu_custom_call.1} parent=5 // pred_check_branch
        %274 = sbr.rel (%p271) target = $region36
      $region35: #{tpu_custom_call.1} parent=5 // pred_region
        %s275 = ssub.s32 %s19, 1
        %p276 = scmp.lt.s32.totalorder %s28, 1
        %s277 = scalar_select %p276, %s28, 1
        %s278 = smul.addr %s277, 4
        %s279 = scalar_lea.vmem %s0, %s278
        %p280 = pneg %p57
        %p281 = pneg %p54
        %p282 = scmp.lt.s32.totalorder %s29, 3
        %s283 = scalar_select %p282, %s29, 3
        %s284 = smul.addr %s283, 4
        %s285 = smul.addr %s284, 4
        %s286 = scalar_lea.vmem %s1, %s285
        %p287 = pneg %p83
        %p288 = pneg %p80
        %p289 = scmp.lt.s32.totalorder %s29, 3
        %s290 = scalar_select %p289, %s29, 3
        %s291 = smul.addr %s290, 4
        %s292 = smul.addr %s291, 4
        %s293 = scalar_lea.vmem %s2, %s292
        %p294 = pneg %p109
        %p295 = pneg %p106
        %p296 = scmp.lt.s32.totalorder %s29, 3
        %s297 = scalar_select %p296, %s29, 3
        %s298 = smul.addr %s297, 4
        %s299 = smul.addr %s298, 4
        %s300 = scalar_lea.vmem %s3, %s299
        %p301 = pneg %p135
        %p302 = pneg %p132
        %p303 = pneg %p163
        %p304 = pneg %p160
        %s305 = sand.u32 %s150, 1
        %s306 = scalar_lea.sflag [#allocation3], %s305
        %s307 = sand.u32 %s150, 1
        %s308 = smul.addr %s307, 4
        %s309 = scalar_lea.vmem [#allocation2], %s308
        %p310 = pneg %p191
        %p311 = pneg %p188
        %s312 = sand.u32 %s24, 1
        %s313 = scalar_lea.sflag [#allocation5], %s312
        %s314 = sand.u32 %s178, 1
        %s315 = smul.addr %s314, 4
        %s316 = scalar_lea.vmem [#allocation4], %s315
        %p317 = pneg %p219
        %p318 = pneg %p216
        %s319 = sand.u32 %s24, 1
        %s320 = scalar_lea.sflag [#allocation5], %s319
        %s321 = sand.u32 %s206, 1
        %s322 = smul.addr %s321, 4
        %s323 = scalar_lea.vmem [#allocation6], %s322
        %p324 = scmp.lt.s32.totalorder %s28, 1
        %s325 = scalar_select %p324, %s28, 1
        %s326 = smul.addr %s325, 4
        %s327 = scalar_lea.vmem %s0, %s326
        %p328 = scmp.lt.s32.totalorder %s29, 3
        %s329 = scalar_select %p328, %s29, 3
        %s330 = smul.addr %s329, 4
        %s331 = smul.addr %s330, 4
        %s332 = scalar_lea.vmem %s1, %s331
        %p333 = scmp.lt.s32.totalorder %s29, 3
        %s334 = scalar_select %p333, %s29, 3
        %s335 = smul.addr %s334, 4
        %s336 = smul.addr %s335, 4
        %s337 = scalar_lea.vmem %s2, %s336
        %p338 = scmp.lt.s32.totalorder %s29, 3
        %s339 = scalar_select %p338, %s29, 3
        %s340 = smul.addr %s339, 4
        %s341 = smul.addr %s340, 4
        %s342 = scalar_lea.vmem %s3, %s341
        %v344 = vld [vmem:[%s327] sm:$0xf]
        %v345 = vld [vmem:[%s332] sm:$0xf]
        %v346 = vld [vmem:[%s332 + $0x4] sm:$0xf]
        %v347 = vld [vmem:[%s332 + $0x8] sm:$0xf]
        %v348 = vld [vmem:[%s332 + $0xc] sm:$0xf]
        %v353 = vunpack.c.l.b16 %v345
        %v354 = vunpack.c.l.b16 %v346
        %v355 = vunpack.c.l.b16 %v347
        %v356 = vunpack.c.l.b16 %v348
        %v357 = vpack.c.b16 %v354, %v353
        %v358 = vpack.c.b16 %v356, %v355
        %vm361 = vcmask 261120
        %v363 = vsel %vm361, %v344, 0
        %365 = vmatprep.subr.bf16.mxu0 0
        %366 = vmatpush1.bf16.msra.mxu0 %v357
        %367 = vmatprep.subr.bf16.mxu0 0
        %368 = vmatpush1.bf16.msra.mxu0 %v358
        %369 = vmatprep.subr.bf16.mxu0 0
        %370 = vmatpush1.bf16.msra.mxu0 0
        %371 = vmatprep.subr.bf16.mxu0 0
        %372 = vmatpush1.bf16.msra.mxu0 0
        %373 = vmatprep.subr.bf16.mxu0 0
        %374 = vmatpush1.bf16.msra.mxu0 0
        %375 = vmatprep.subr.bf16.mxu0 0
        %376 = vmatpush1.bf16.msra.mxu0 0
        %377 = vmatprep.subr.bf16.mxu0 0
        %378 = vmatpush1.bf16.msra.mxu0 0
        %379 = vmatprep.subr.bf16.mxu0 0
        %380 = vmatpush1.bf16.msra.mxu0 0
        %381 = vmatprep.subr.bf16.mxu0 0
        %382 = vmatpush1.bf16.msra.mxu0 0
        %383 = vmatprep.subr.bf16.mxu0 0
        %384 = vmatpush1.bf16.msra.mxu0 0
        %385 = vmatprep.subr.bf16.mxu0 0
        %386 = vmatpush1.bf16.msra.mxu0 0
        %387 = vmatprep.subr.bf16.mxu0 0
        %388 = vmatpush1.bf16.msra.mxu0 0
        %389 = vmatprep.subr.bf16.mxu0 0
        %390 = vmatpush1.bf16.msra.mxu0 0
        %391 = vmatprep.subr.bf16.mxu0 0
        %392 = vmatpush1.bf16.msra.mxu0 0
        %393 = vmatprep.subr.bf16.mxu0 0
        %394 = vmatpush1.bf16.msra.mxu0 0
        %395 = vmatprep.subr.bf16.mxu0 0
        %396 = vmatpush1.bf16.msra.mxu0 0
        %397 = vmatprep.mubr.bf16.mxu0 0
        %398 = vmatmul.mubr.bf16.gmra.mrb[0].mxu0 %v363
        %v399 = vpop.f32.mrb[0].mxu0
        %v400 = vadd.f32 0.0, %v399
        %v401 = vpop.f32.mrb[0].mxu0
        %v402 = vpop.f32.mrb[0].mxu0
        %v403 = vpop.f32.mrb[0].mxu0
        %404 = vdwg.mxu0
        %v405 = vpack.c.bf16 %v400, %v400
        %vm406 = vcmask 60416
        %407 = vst.msk [vmem:[%s309] sm:$0xf] %vm406, %v405
        %v408 = vld [vmem:[%s337] sm:$0xf]
        %v409 = vld [vmem:[%s337 + $0x4] sm:$0xf]
        %v410 = vld [vmem:[%s337 + $0x8] sm:$0xf]
        %v411 = vld [vmem:[%s337 + $0xc] sm:$0xf]
        %v416 = vunpack.c.l.b16 %v408
        %v417 = vunpack.c.l.b16 %v409
        %v418 = vunpack.c.l.b16 %v410
        %v419 = vunpack.c.l.b16 %v411
        %v420 = vpack.c.b16 %v417, %v416
        %v421 = vpack.c.b16 %v419, %v418
        %424 = vmatprep.subr.bf16.mxu0 0
        %425 = vmatpush1.bf16.msra.mxu0 %v420
        %426 = vmatprep.subr.bf16.mxu0 0
        %427 = vmatpush1.bf16.msra.mxu0 %v421
        %428 = vmatprep.subr.bf16.mxu0 0
        %429 = vmatpush1.bf16.msra.mxu0 0
        %430 = vmatprep.subr.bf16.mxu0 0
        %431 = vmatpush1.bf16.msra.mxu0 0
        %432 = vmatprep.subr.bf16.mxu0 0
        %433 = vmatpush1.bf16.msra.mxu0 0
        %434 = vmatprep.subr.bf16.mxu0 0
        %435 = vmatpush1.bf16.msra.mxu0 0
        %436 = vmatprep.subr.bf16.mxu0 0
        %437 = vmatpush1.bf16.msra.mxu0 0
        %438 = vmatprep.subr.bf16.mxu0 0
        %439 = vmatpush1.bf16.msra.mxu0 0
        %440 = vmatprep.subr.bf16.mxu0 0
        %441 = vmatpush1.bf16.msra.mxu0 0
        %442 = vmatprep.subr.bf16.mxu0 0
        %443 = vmatpush1.bf16.msra.mxu0 0
        %444 = vmatprep.subr.bf16.mxu0 0
        %445 = vmatpush1.bf16.msra.mxu0 0
        %446 = vmatprep.subr.bf16.mxu0 0
        %447 = vmatpush1.bf16.msra.mxu0 0
        %448 = vmatprep.subr.bf16.mxu0 0
        %449 = vmatpush1.bf16.msra.mxu0 0
        %450 = vmatprep.subr.bf16.mxu0 0
        %451 = vmatpush1.bf16.msra.mxu0 0
        %452 = vmatprep.subr.bf16.mxu0 0
        %453 = vmatpush1.bf16.msra.mxu0 0
        %454 = vmatprep.subr.bf16.mxu0 0
        %455 = vmatpush1.bf16.msra.mxu0 0
        %456 = vmatprep.mubr.bf16.mxu0 0
        %457 = vmatmul.mubr.bf16.gmra.mrb[0].mxu0 %v363
        %v458 = vpop.f32.mrb[0].mxu0
        %v459 = vadd.f32 0.0, %v458
        %v460 = vpop.f32.mrb[0].mxu0
        %v461 = vpop.f32.mrb[0].mxu0
        %v462 = vpop.f32.mrb[0].mxu0
        %463 = vdwg.mxu0
        %v464 = vpack.c.bf16 %v459, %v459
        %465 = vst.msk [vmem:[%s316] sm:$0xf] %vm406, %v464
        %v466 = vld [vmem:[%s342] sm:$0xf]
        %v467 = vld [vmem:[%s342 + $0x4] sm:$0xf]
        %v468 = vld [vmem:[%s342 + $0x8] sm:$0xf]
        %v469 = vld [vmem:[%s342 + $0xc] sm:$0xf]
        %v474 = vunpack.c.l.b16 %v466
        %v475 = vunpack.c.l.b16 %v467
        %v476 = vunpack.c.l.b16 %v468
        %v477 = vunpack.c.l.b16 %v469
        %v478 = vpack.c.b16 %v475, %v474
        %v479 = vpack.c.b16 %v477, %v476
        %482 = vmatprep.subr.bf16.mxu0 0
        %483 = vmatpush1.bf16.msra.mxu0 %v478
        %484 = vmatprep.subr.bf16.mxu0 0
        %485 = vmatpush1.bf16.msra.mxu0 %v479
        %486 = vmatprep.subr.bf16.mxu0 0
        %487 = vmatpush1.bf16.msra.mxu0 0
        %488 = vmatprep.subr.bf16.mxu0 0
        %489 = vmatpush1.bf16.msra.mxu0 0
        %490 = vmatprep.subr.bf16.mxu0 0
        %491 = vmatpush1.bf16.msra.mxu0 0
        %492 = vmatprep.subr.bf16.mxu0 0
        %493 = vmatpush1.bf16.msra.mxu0 0
        %494 = vmatprep.subr.bf16.mxu0 0
        %495 = vmatpush1.bf16.msra.mxu0 0
        %496 = vmatprep.subr.bf16.mxu0 0
        %497 = vmatpush1.bf16.msra.mxu0 0
        %498 = vmatprep.subr.bf16.mxu0 0
        %499 = vmatpush1.bf16.msra.mxu0 0
        %500 = vmatprep.subr.bf16.mxu0 0
        %501 = vmatpush1.bf16.msra.mxu0 0
        %502 = vmatprep.subr.bf16.mxu0 0
        %503 = vmatpush1.bf16.msra.mxu0 0
        %504 = vmatprep.subr.bf16.mxu0 0
        %505 = vmatpush1.bf16.msra.mxu0 0
        %506 = vmatprep.subr.bf16.mxu0 0
        %507 = vmatpush1.bf16.msra.mxu0 0
        %508 = vmatprep.subr.bf16.mxu0 0
        %509 = vmatpush1.bf16.msra.mxu0 0
        %510 = vmatprep.subr.bf16.mxu0 0
        %511 = vmatpush1.bf16.msra.mxu0 0
        %512 = vmatprep.subr.bf16.mxu0 0
        %513 = vmatpush1.bf16.msra.mxu0 0
        %514 = vmatprep.mubr.bf16.mxu0 0
        %515 = vmatmul.mubr.bf16.gmra.mrb[0].mxu0 %v363
        %v516 = vpop.f32.mrb[0].mxu0
        %v517 = vadd.f32 0.0, %v516
        %v518 = vpop.f32.mrb[0].mxu0
        %v519 = vpop.f32.mrb[0].mxu0
        %v520 = vpop.f32.mrb[0].mxu0
        %521 = vdwg.mxu0
        %v522 = vpack.c.bf16 %v517, %v517
        %523 = vst.msk [vmem:[%s323] sm:$0xf] %vm406, %v522
        %s524 = sand.u32 %s150, 1
        %s525 = scalar_lea.sflag [#allocation3], %s524
        %s526 = sand.u32 %s150, 1
        %s527 = smul.addr %s526, 4
        %s528 = scalar_lea.vmem [#allocation2], %s527
        %s529 = sand.u32 %s24, 1
        %s530 = scalar_lea.sflag [#allocation5], %s529
        %s531 = sand.u32 %s178, 1
        %s532 = smul.addr %s531, 4
        %s533 = scalar_lea.vmem [#allocation4], %s532
        %s534 = sand.u32 %s24, 1
        %s535 = scalar_lea.sflag [#allocation5], %s534
        %s536 = sand.u32 %s206, 1
        %s537 = smul.addr %s536, 4
        %s538 = scalar_lea.vmem [#allocation6], %s537
        // Predicated region
        $region37: #{tpu_custom_call.1} parent=35 // pred_check
          %p539 = pneg %p160
        $region38: #{tpu_custom_call.1} parent=35 // pred_check_branch
          %541 = sbr.rel (%p539) target = $region40
        $region39: #{tpu_custom_call.1} parent=35 // pred_region
          %s543 = ssub.s32 64, 64
          %544 = vsyncadd %s525, %s543
          %s545 = smul.addr %s28, 4
          %s546 = sadd.s32 %s29, %s545
          %s547 = smul.addr %s546, 64
          %s548 = scalar_lea.hbm %s4, %s547
          %s550 = sshll.u32 %s528, 4
          %s551 = int_to_ptr.vmem [resolvable:$true] %s550
          %553 = dma.vmem_to_hbm [thread:$0]  %s551, 64, %s548, %s525
        $region40: #{tpu_custom_call.1} parent=35 // pred_fallthru
          _
        // Predicated region
        $region41: #{tpu_custom_call.1} parent=35 // pred_check
          %p554 = pneg %p188
        $region42: #{tpu_custom_call.1} parent=35 // pred_check_branch
          %556 = sbr.rel (%p554) target = $region44
        $region43: #{tpu_custom_call.1} parent=35 // pred_region
          %s558 = ssub.s32 64, 64
          %559 = vsyncadd %s530, %s558
          %s560 = smul.addr %s28, 4
          %s561 = sadd.s32 %s29, %s560
          %s562 = smul.addr %s561, 64
          %s563 = scalar_lea.hbm %s5, %s562
          %s565 = sshll.u32 %s533, 4
          %s566 = int_to_ptr.vmem [resolvable:$true] %s565
          %568 = dma.vmem_to_hbm [thread:$0]  %s566, 64, %s563, %s530
        $region44: #{tpu_custom_call.1} parent=35 // pred_fallthru
          _
        // Predicated region
        $region45: #{tpu_custom_call.1} parent=35 // pred_check
          %p569 = pneg %p216
        $region46: #{tpu_custom_call.1} parent=35 // pred_check_branch
          %571 = sbr.rel (%p569) target = $region48
        $region47: #{tpu_custom_call.1} parent=35 // pred_region
          %s573 = ssub.s32 64, 64
          %574 = vsyncadd %s535, %s573
          %s575 = smul.addr %s28, 4
          %s576 = sadd.s32 %s29, %s575
          %s577 = smul.addr %s576, 64
          %s578 = scalar_lea.hbm %s6, %s577
          %s580 = sshll.u32 %s538, 4
          %s581 = int_to_ptr.vmem [resolvable:$true] %s580
          %583 = dma.vmem_to_hbm [thread:$0]  %s581, 64, %s578, %s535
        $region48: #{tpu_custom_call.1} parent=35 // pred_fallthru
          _
      $region36: #{tpu_custom_call.1} parent=5 // pred_fallthru
        _
      %p584 = scmp.le.s32.totalorder 2, %s19
      // Predicated region
      $region49: #{tpu_custom_call.1} parent=5 // pred_check
        %p585 = pneg %p584
      $region50: #{tpu_custom_call.1} parent=5 // pred_check_branch
        %587 = sbr.rel (%p585) target = $region52
      $region51: #{tpu_custom_call.1} parent=5 // pred_region
        %s588 = ssub.s32 %s19, 2
        // Predicated region
        $region53: #{tpu_custom_call.1} parent=51 // pred_check
          %p589 = pneg %p166
        $region54: #{tpu_custom_call.1} parent=51 // pred_check_branch
          %591 = sbr.rel (%p589) target = $region56
        $region55: #{tpu_custom_call.1} parent=51 // pred_region
          %s592 = sand.u32 %s151, 1
          %s593 = scalar_lea.sflag [#allocation3], %s592
          %s594 = sand.u32 %s151, 1
          %s595 = smul.addr %s594, 4
          %s596 = scalar_lea.vmem [#allocation2], %s595
          %597 = dma.done %s593, 64
        $region56: #{tpu_custom_call.1} parent=51 // pred_fallthru
          _
        // Predicated region
        $region57: #{tpu_custom_call.1} parent=51 // pred_check
          %p598 = pneg %p194
        $region58: #{tpu_custom_call.1} parent=51 // pred_check_branch
          %600 = sbr.rel (%p598) target = $region60
        $region59: #{tpu_custom_call.1} parent=51 // pred_region
          %s601 = sand.u32 %s25, 1
          %s602 = scalar_lea.sflag [#allocation5], %s601
          %s603 = sand.u32 %s179, 1
          %s604 = smul.addr %s603, 4
          %s605 = scalar_lea.vmem [#allocation4], %s604
          %606 = dma.done %s602, 64
        $region60: #{tpu_custom_call.1} parent=51 // pred_fallthru
          _
        // Predicated region
        $region61: #{tpu_custom_call.1} parent=51 // pred_check
          %p607 = pneg %p222
        $region62: #{tpu_custom_call.1} parent=51 // pred_check_branch
          %609 = sbr.rel (%p607) target = $region64
        $region63: #{tpu_custom_call.1} parent=51 // pred_region
          %s610 = sand.u32 %s25, 1
          %s611 = scalar_lea.sflag [#allocation5], %s610
          %s612 = sand.u32 %s207, 1
          %s613 = smul.addr %s612, 4
          %s614 = scalar_lea.vmem [#allocation6], %s613
          %615 = dma.done %s611, 64
        $region64: #{tpu_custom_call.1} parent=51 // pred_fallthru
          _
      $region52: #{tpu_custom_call.1} parent=5 // pred_fallthru
        _
    $region6: #{tpu_custom_call.1} parent=1 // loop_footer
      %s23 = sadd.s32 1, %s19
    $region7: #{tpu_custom_call.1} parent=1 // loop_footer_branch
      %18 = sbr.rel target = $region3
    $region8: #{tpu_custom_call.1} parent=1 // loop_exit
      _
    %616 = vsyncpa [#allocation3], 1
    %s617 = scalar_lea.sflag [#allocation3], 1
    %618 = vsyncpa %s617, 1
    %619 = vsyncpa [#allocation5], 1
    %s620 = scalar_lea.sflag [#allocation5], 1
    %621 = vsyncpa %s620, 1

</llo_original>
